<compile_context>
chip_gen: v5e
topology: v5e:2x2
jax: 0.10.0
libtpu: 0.0.40
codegen_flags: <defaults>
</compile_context>

<pallas_src>
import functools

import jax
import jax.numpy as jnp
from jax.experimental import pallas as pl
from jax.experimental.pallas import tpu as pltpu


def _round_up(x, m):
    return ((x + m - 1) // m) * m


def _round_down(x, m):
    return (x // m) * m


def _ce_partial_kernel(logit_ref, tgt_ref, sum_ref, cnt_ref, acc_loss, acc_cnt,
                       *, ignore_index, total_pixels):
    """Accumulate masked per-pixel CE; emit per-image partial sum/count.

    Grid = (N images [parallel], pixel chunks [arbitrary]).
    """
    pj = pl.program_id(1)
    tile_p = tgt_ref.shape[-1]

    @pl.when(pj == 0)
    def _():
        acc_loss[...] = jnp.zeros_like(acc_loss)
        acc_cnt[...] = jnp.zeros_like(acc_cnt)

    x = logit_ref[0].astype(jnp.float32)     # (C, TP): classes on sublanes
    t = tgt_ref[0]                           # (1, TP) int32
    c = x.shape[0]

    # Numerically-stable log-softmax pieces (reductions over the class axis).
    m = jnp.max(x, axis=0, keepdims=True)                             # (1, TP)
    xm = x - m
    lse_rel = jnp.log(jnp.sum(jnp.exp(xm), axis=0, keepdims=True))    # (1, TP)

    # Gather the logit at the target class via a one-hot select.  The class
    # iota is (C, 1) and broadcasts against t (1, TP) -> (C, TP) compare,
    # avoiding a materialized (C, TP) iota each step.  ignore_index >= C
    # matches nothing, so ignored pixels contribute 0 even before masking.
    cls = jax.lax.broadcasted_iota(jnp.int32, (c, 1), 0)              # (C, 1)
    tgt_rel = jnp.sum(jnp.where(cls == t, xm, 0.0), axis=0, keepdims=True)

    # Mask: not ignore_index AND inside the (possibly ragged/padded) range.
    pix = pj * tile_p + jax.lax.broadcasted_iota(jnp.int32, t.shape, 1)
    valid = (t != ignore_index) & (pix < total_pixels)

    per_pixel = lse_rel - tgt_rel                                     # (1, TP)
    acc_loss[...] += jnp.where(valid, per_pixel, 0.0)
    acc_cnt[...] += jnp.where(valid, 1.0, 0.0)

    @pl.when(pj == pl.num_programs(1) - 1)
    def _():
        sum_ref[...] = jnp.sum(acc_loss[...], axis=1,
                               keepdims=True).reshape(1, 1, 1)
        cnt_ref[...] = jnp.sum(acc_cnt[...], axis=1,
                               keepdims=True).reshape(1, 1, 1)


def _masked_ce_mean(logits_nchw, target_nhw, *, ignore_index=255,
                    step_bytes_target=4 << 20):
    """Mean cross-entropy over non-ignored pixels (== nn.CrossEntropyLoss)."""
    n, c, h, w = logits_nchw.shape
    hw = h * w
    itemsize = logits_nchw.dtype.itemsize

    # Free reshapes only: keep NCHW order, put pixels on the lane axis.
    x = logits_nchw.reshape(n, c, hw)
    t = target_nhw.reshape(n, 1, hw).astype(jnp.int32)

    if hw < 128:
        # Tiny spatial extent: pad the pixel axis up to one 128-lane tile.
        pad = 128 - hw
        x = jnp.pad(x, ((0, 0), (0, 0), (0, pad)))
        t = jnp.pad(t, ((0, 0), (0, 0), (0, pad)), constant_values=ignore_index)
        hw_lanes = 128
    else:
        hw_lanes = hw

    # ---- VMEM-layout-aware byte accounting --------------------------------
    # Sublane padding of the class axis: f32 -> 8, bf16 -> 16, int8 -> 32.
    sublane = 8 * max(1, 4 // itemsize)
    c_pad = _round_up(c, sublane)
    # Per-pixel VMEM bytes: 2x double-buffered logit/target blocks + two
    # (1, tile_p) f32 scratch accumulators (8x sublane-padded), target block
    # (1, 1, tile_p) int32 also sublane-padded to 8.
    per_pixel_bytes = (2 * c_pad * itemsize       # logit blocks
                       + 2 * 8 * 4                # target blocks
                       + 2 * 8 * 4)               # scratch accumulators

    try:
        vmem_cap = int(pltpu.get_tpu_info().vmem_capacity_bytes)
    except Exception:
        vmem_cap = 64 << 20                       # conservative (v7x) fallback
    vmem_budget = int(0.5 * vmem_cap)

    # ---- Byte-targeted pixel tile (amortizes ~0.35us per-grid-step cost) ---
    tile_from_bytes = step_bytes_target // max(1, c * itemsize)
    tile_from_vmem = vmem_budget // per_pixel_bytes
    tile_cap_hw = max(128, _round_down(hw_lanes, 128))
    tile_p = max(128, _round_down(
        min(tile_from_bytes, tile_from_vmem, tile_cap_hw), 128))

    num_chunks = pl.cdiv(hw_lanes, tile_p)
    grid = (n, num_chunks)

    logit_block_bytes = c_pad * tile_p * itemsize
    # Triple-buffer the logit stream only when the per-step block is small
    # (small C) and the chunk loop is long enough to benefit.
    logit_buffers = 3 if (logit_block_bytes < (1 << 20) and num_chunks > 4) else 2

    needed = (logit_buffers * logit_block_bytes
              + 2 * 8 * tile_p * 4                # target blocks
              + 2 * 8 * tile_p * 4)               # scratch accumulators
    vmem_limit = int(min(max(needed + (4 << 20), 16 << 20),
                         max(16 << 20, int(0.75 * vmem_cap))))

    logit_spec_kwargs = {}
    if logit_buffers == 3:
        logit_spec_kwargs["pipeline_mode"] = pl.Buffered(3)

    kernel = functools.partial(
        _ce_partial_kernel, ignore_index=ignore_index, total_pixels=hw)

    loss_sum, valid_cnt = pl.pallas_call(
        kernel,
        out_shape=(
            jax.ShapeDtypeStruct((n, 1, 1), jnp.float32),
            jax.ShapeDtypeStruct((n, 1, 1), jnp.float32),
        ),
        grid=grid,
        in_specs=[
            pl.BlockSpec((1, c, tile_p), lambda ni, pj: (ni, 0, pj),
                         **logit_spec_kwargs),
            pl.BlockSpec((1, 1, tile_p), lambda ni, pj: (ni, 0, pj)),
        ],
        out_specs=(
            pl.BlockSpec((1, 1, 1), lambda ni, pj: (ni, 0, 0)),
            pl.BlockSpec((1, 1, 1), lambda ni, pj: (ni, 0, 0)),
        ),
        scratch_shapes=[
            pltpu.VMEM((1, tile_p), jnp.float32),
            pltpu.VMEM((1, tile_p), jnp.float32),
        ],
        compiler_params=pltpu.CompilerParams(
            dimension_semantics=("parallel", "arbitrary"),
            vmem_limit_bytes=vmem_limit),
    )(x, t)

    # NOTE: if every pixel is ignore_index, this is 0/0 -> NaN, matching
    # PyTorch's CrossEntropyLoss behavior for fully-ignored targets.
    return jnp.sum(loss_sum) / jnp.sum(valid_cnt)


def segmentation_loss(logits, target, *, mode="ce", ignore_index=255,
                      batch_average=True, gamma=1.0, alpha=0.5):
    """JAX/Pallas equivalent of SegmentationLosses.forward (weight=None)."""
    n = logits.shape[0]
    ce = _masked_ce_mean(logits, target, ignore_index=ignore_index)

    if mode == "ce":
        loss = ce
    elif mode == "focal":
        # Matches the module's (scalar) focal transform of the mean CE.
        logpt = -ce
        pt = jnp.exp(logpt)
        if alpha is not None:
            logpt = logpt * alpha
        loss = -((1.0 - pt) ** gamma) * logpt
    else:
        raise NotImplementedError(mode)

    if batch_average:
        loss = loss / n
    return loss


def _reference_loss(logits, target, *, mode="ce", ignore_index=255,
                    batch_average=True, gamma=1.0, alpha=0.5):
    """Pure-JAX reference for validation."""
    n, c, h, w = logits.shape
    x = jnp.transpose(logits, (0, 2, 3, 1)).reshape(-1, c).astype(jnp.float32)
    t = target.reshape(-1).astype(jnp.int32)
    logp = jax.nn.log_softmax(x, axis=-1)
    valid = t != ignore_index
    t_safe = jnp.where(valid, t, 0)
    nll = -jnp.take_along_axis(logp, t_safe[:, None], axis=-1)[:, 0]
    ce = jnp.sum(jnp.where(valid, nll, 0.0)) / jnp.sum(valid.astype(jnp.float32))
    if mode == "ce":
        loss = ce
    else:
        logpt = -ce
        pt = jnp.exp(logpt)
        logpt = logpt * alpha
        loss = -((1.0 - pt) ** gamma) * logpt
    if batch_average:
        loss = loss / n
    return loss


if __name__ == "__main__":
    key = jax.random.PRNGKey(0)

    def make_inputs(k, n, c, h, w, ignore_frac=0.1):
        k1, k2, k3 = jax.random.split(k, 3)
        logits = jax.random.normal(k1, (n, c, h, w), dtype=jnp.float32)
        target = jax.random.randint(k2, (n, h, w), 0, c, dtype=jnp.int32)
        ignore = jax.random.uniform(k3, (n, h, w)) < ignore_frac
        target = jnp.where(ignore, 255, target)
        return logits, target

    k_a, k_b, k_c = jax.random.split(key, 3)

    # Primary shape (N, C, H, W) = (2, 4, 16, 16), both modes.
    logits, target = make_inputs(k_a, 2, 4, 16, 16)
    loss_ce = jax.block_until_ready(segmentation_loss(logits, target, mode="ce"))
    loss_focal = jax.block_until_ready(
        segmentation_loss(logits, target, mode="focal"))
    ref_ce = _reference_loss(logits, target, mode="ce")
    ref_focal = _reference_loss(logits, target, mode="focal")
    assert jnp.allclose(loss_ce, ref_ce, atol=1e-5, rtol=1e-5), (loss_ce, ref_ce)
    assert jnp.allclose(loss_focal, ref_focal, atol=1e-5, rtol=1e-5), (
        loss_focal, ref_focal)

    # Ragged spatial extent (H*W not a multiple of 128): exercises tail mask.
    logits2, target2 = make_inputs(k_b, 2, 4, 9, 15)
    l2 = jax.block_until_ready(segmentation_loss(logits2, target2, mode="ce"))
    r2 = _reference_loss(logits2, target2, mode="ce")
    assert jnp.allclose(l2, r2, atol=1e-5, rtol=1e-5), (l2, r2)

    # Tiny spatial extent (< 128 pixels): exercises the lane-pad path.
    logits3, target3 = make_inputs(k_c, 1, 3, 8, 8)
    l3 = jax.block_until_ready(segmentation_loss(logits3, target3, mode="ce"))
    r3 = _reference_loss(logits3, target3, mode="ce")
    assert jnp.allclose(l3, r3, atol=1e-5, rtol=1e-5), (l3, r3)

    print("KERNEL_OK")
</pallas_src>

<mosaic_0001>
module attributes {stable_mosaic.version = 11 : i64} {
  func.func @_ce_partial_kernel(%arg0: i32, %arg1: i32, %arg2: memref<1x4x256xf32, #tpu.memory_space<vmem>>, %arg3: memref<1x1x256xi32, #tpu.memory_space<vmem>>, %arg4: memref<1x1x1xf32, #tpu.memory_space<vmem>>, %arg5: memref<1x1x1xf32, #tpu.memory_space<vmem>>, %arg6: memref<1x256xf32, #tpu.memory_space<vmem>>, %arg7: memref<1x256xf32, #tpu.memory_space<vmem>>) attributes {dimension_semantics = [#tpu.dimension_semantics<parallel>, #tpu.dimension_semantics<arbitrary>], iteration_bounds = array<i64: 2, 1>, scalar_prefetch = 0 : i64, scratch_operands = 2 : i64, tpu.core_type = #tpu.core_type<tc>, window_params = [{transform_indices = @transform_0, window_bounds = array<i64: 1, 4, 256>}, {transform_indices = @transform_1, window_bounds = array<i64: 1, 1, 256>}, {transform_indices = @transform_2, window_bounds = array<i64: 1, 1, 1>}, {transform_indices = @transform_3, window_bounds = array<i64: 1, 1, 1>}]} {
    %c0_i32 = arith.constant 0 : i32
    %0 = arith.cmpi eq, %arg1, %c0_i32 : i32
    %1 = arith.extui %0 : i1 to i32
    %c0_i32_0 = arith.constant 0 : i32
    %2 = arith.cmpi ne, %1, %c0_i32_0 : i32
    scf.if %2 {
      %cst_23 = arith.constant 0.000000e+00 : f32
      %47 = vector.broadcast %cst_23 : f32 to vector<1x256xf32>
      %c0_24 = arith.constant 0 : index
      %c0_25 = arith.constant 0 : index
      %48 = vector.load %arg6[%c0_24, %c0_25] : memref<1x256xf32, #tpu.memory_space<vmem>>, vector<1x256xf32>
      tpu.vector_store %arg6[%c0_24, %c0_25], %47 {strides = array<i32>} : memref<1x256xf32, #tpu.memory_space<vmem>>, vector<1x256xf32>,
      %cst_26 = arith.constant 0.000000e+00 : f32
      %49 = vector.broadcast %cst_26 : f32 to vector<1x256xf32>
      %c0_27 = arith.constant 0 : index
      %c0_28 = arith.constant 0 : index
      %50 = vector.load %arg7[%c0_27, %c0_28] : memref<1x256xf32, #tpu.memory_space<vmem>>, vector<1x256xf32>
      tpu.vector_store %arg7[%c0_27, %c0_28], %49 {strides = array<i32>} : memref<1x256xf32, #tpu.memory_space<vmem>>, vector<1x256xf32>,
    } else {
    }
    %c0 = arith.constant 0 : index
    %c0_1 = arith.constant 0 : index
    %c0_2 = arith.constant 0 : index
    %3 = vector.load %arg2[%c0, %c0_1, %c0_2] : memref<1x4x256xf32, #tpu.memory_space<vmem>>, vector<1x4x256xf32>
    %4 = vector.shape_cast %3 : vector<1x4x256xf32> to vector<4x256xf32>
    %c0_3 = arith.constant 0 : index
    %c0_4 = arith.constant 0 : index
    %c0_5 = arith.constant 0 : index
    %5 = vector.load %arg3[%c0_3, %c0_4, %c0_5] : memref<1x1x256xi32, #tpu.memory_space<vmem>>, vector<1x1x256xi32>
    %6 = vector.shape_cast %5 : vector<1x1x256xi32> to vector<1x256xi32>
    %cst = arith.constant dense<0xFF800000> : vector<256xf32>
    %7 = vector.multi_reduction <maximumf>, %4, %cst [0] : vector<4x256xf32> to vector<256xf32>
    %8 = vector.shape_cast %7 : vector<256xf32> to vector<1x256xf32>
    %9 = vector.broadcast %8 : vector<1x256xf32> to vector<4x256xf32>
    %10 = arith.subf %4, %9 : vector<4x256xf32>
    %11 = math.exp %10 : vector<4x256xf32>
    %cst_6 = arith.constant dense<0.000000e+00> : vector<256xf32>
    %12 = vector.multi_reduction <add>, %11, %cst_6 [0] : vector<4x256xf32> to vector<256xf32>
    %13 = vector.shape_cast %12 : vector<256xf32> to vector<1x256xf32>
    %14 = math.log %13 : vector<1x256xf32>
    %15 = tpu.iota {dimensions = array<i32: 0>} : vector<4x1xi32>
    %16 = vector.broadcast %15 : vector<4x1xi32> to vector<4x256xi32>
    %17 = vector.broadcast %6 : vector<1x256xi32> to vector<4x256xi32>
    %18 = arith.cmpi eq, %16, %17 : vector<4x256xi32>
    %cst_7 = arith.constant 0.000000e+00 : f32
    %19 = vector.broadcast %cst_7 : f32 to vector<4x256xf32>
    %20 = arith.select %18, %10, %19 : vector<4x256xi1>, vector<4x256xf32>
    %cst_8 = arith.constant dense<0.000000e+00> : vector<256xf32>
    %21 = vector.multi_reduction <add>, %20, %cst_8 [0] : vector<4x256xf32> to vector<256xf32>
    %22 = vector.shape_cast %21 : vector<256xf32> to vector<1x256xf32>
    %c256_i32 = arith.constant 256 : i32
    %23 = arith.muli %arg1, %c256_i32 : i32
    %24 = tpu.iota {dimensions = array<i32: 1>} : vector<1x256xi32>
    %25 = vector.broadcast %23 : i32 to vector<1x256xi32>
    %26 = arith.addi %25, %24 : vector<1x256xi32>
    %c255_i32 = arith.constant 255 : i32
    %27 = vector.broadcast %c255_i32 : i32 to vector<1x256xi32>
    %28 = arith.cmpi ne, %6, %27 : vector<1x256xi32>
    %c256_i32_9 = arith.constant 256 : i32
    %29 = vector.broadcast %c256_i32_9 : i32 to vector<1x256xi32>
    %30 = arith.cmpi slt, %26, %29 : vector<1x256xi32>
    %31 = arith.andi %28, %30 : vector<1x256xi1>
    %32 = arith.subf %14, %22 : vector<1x256xf32>
    %c0_10 = arith.constant 0 : index
    %c0_11 = arith.constant 0 : index
    %33 = vector.load %arg6[%c0_10, %c0_11] : memref<1x256xf32, #tpu.memory_space<vmem>>, vector<1x256xf32>
    %cst_12 = arith.constant 0.000000e+00 : f32
    %34 = vector.broadcast %cst_12 : f32 to vector<1x256xf32>
    %35 = arith.select %31, %32, %34 : vector<1x256xi1>, vector<1x256xf32>
    %36 = arith.addf %33, %35 : vector<1x256xf32>
    %c0_13 = arith.constant 0 : index
    %c0_14 = arith.constant 0 : index
    %37 = vector.load %arg6[%c0_13, %c0_14] : memref<1x256xf32, #tpu.memory_space<vmem>>, vector<1x256xf32>
    tpu.vector_store %arg6[%c0_13, %c0_14], %36 {strides = array<i32>} : memref<1x256xf32, #tpu.memory_space<vmem>>, vector<1x256xf32>,
    %c0_15 = arith.constant 0 : index
    %c0_16 = arith.constant 0 : index
    %38 = vector.load %arg7[%c0_15, %c0_16] : memref<1x256xf32, #tpu.memory_space<vmem>>, vector<1x256xf32>
    %cst_17 = arith.constant 1.000000e+00 : f32
    %cst_18 = arith.constant 0.000000e+00 : f32
    %39 = vector.broadcast %cst_17 : f32 to vector<1x256xf32>
    %40 = vector.broadcast %cst_18 : f32 to vector<1x256xf32>
    %41 = arith.select %31, %39, %40 : vector<1x256xi1>, vector<1x256xf32>
    %42 = arith.addf %38, %41 : vector<1x256xf32>
    %c0_19 = arith.constant 0 : index
    %c0_20 = arith.constant 0 : index
    %43 = vector.load %arg7[%c0_19, %c0_20] : memref<1x256xf32, #tpu.memory_space<vmem>>, vector<1x256xf32>
    tpu.vector_store %arg7[%c0_19, %c0_20], %42 {strides = array<i32>} : memref<1x256xf32, #tpu.memory_space<vmem>>, vector<1x256xf32>,
    %c0_i32_21 = arith.constant 0 : i32
    %44 = arith.cmpi eq, %arg1, %c0_i32_21 : i32
    %45 = arith.extui %44 : i1 to i32
    %c0_i32_22 = arith.constant 0 : i32
    %46 = arith.cmpi ne, %45, %c0_i32_22 : i32
    scf.if %46 {
      %c0_23 = arith.constant 0 : index
      %c0_24 = arith.constant 0 : index
      %47 = vector.load %arg6[%c0_23, %c0_24] : memref<1x256xf32, #tpu.memory_space<vmem>>, vector<1x256xf32>
      %cst_25 = arith.constant dense<0.000000e+00> : vector<1xf32>
      %48 = vector.multi_reduction <add>, %47, %cst_25 [1] : vector<1x256xf32> to vector<1xf32>
      %49 = vector.shape_cast %48 : vector<1xf32> to vector<1x1xf32>
      %50 = vector.shape_cast %49 : vector<1x1xf32> to vector<1x1x1xf32>
      %c0_26 = arith.constant 0 : index
      %c0_27 = arith.constant 0 : index
      %c0_28 = arith.constant 0 : index
      %51 = vector.load %arg4[%c0_26, %c0_27, %c0_28] : memref<1x1x1xf32, #tpu.memory_space<vmem>>, vector<1x1x1xf32>
      tpu.vector_store %arg4[%c0_26, %c0_27, %c0_28], %50 {strides = array<i32>} : memref<1x1x1xf32, #tpu.memory_space<vmem>>, vector<1x1x1xf32>,
      %c0_29 = arith.constant 0 : index
      %c0_30 = arith.constant 0 : index
      %52 = vector.load %arg7[%c0_29, %c0_30] : memref<1x256xf32, #tpu.memory_space<vmem>>, vector<1x256xf32>
      %cst_31 = arith.constant dense<0.000000e+00> : vector<1xf32>
      %53 = vector.multi_reduction <add>, %52, %cst_31 [1] : vector<1x256xf32> to vector<1xf32>
      %54 = vector.shape_cast %53 : vector<1xf32> to vector<1x1xf32>
      %55 = vector.shape_cast %54 : vector<1x1xf32> to vector<1x1x1xf32>
      %c0_32 = arith.constant 0 : index
      %c0_33 = arith.constant 0 : index
      %c0_34 = arith.constant 0 : index
      %56 = vector.load %arg5[%c0_32, %c0_33, %c0_34] : memref<1x1x1xf32, #tpu.memory_space<vmem>>, vector<1x1x1xf32>
      tpu.vector_store %arg5[%c0_32, %c0_33, %c0_34], %55 {strides = array<i32>} : memref<1x1x1xf32, #tpu.memory_space<vmem>>, vector<1x1x1xf32>,
    } else {
    }
    return
  }
  func.func @transform_0(%arg0: i32, %arg1: i32) -> (i32, i32, i32) {
    %c0_i32 = arith.constant 0 : i32
    %c0_i32_0 = arith.constant 0 : i32
    return %arg0, %c0_i32, %arg1 : i32, i32, i32
  }
  func.func @transform_1(%arg0: i32, %arg1: i32) -> (i32, i32, i32) {
    %c0_i32 = arith.constant 0 : i32
    %c0_i32_0 = arith.constant 0 : i32
    return %arg0, %c0_i32, %arg1 : i32, i32, i32
  }
  func.func @transform_2(%arg0: i32, %arg1: i32) -> (i32, i32, i32) {
    %c0_i32 = arith.constant 0 : i32
    %c0_i32_0 = arith.constant 0 : i32
    %c0_i32_1 = arith.constant 0 : i32
    return %arg0, %c0_i32, %c0_i32_0 : i32, i32, i32
  }
  func.func @transform_3(%arg0: i32, %arg1: i32) -> (i32, i32, i32) {
    %c0_i32 = arith.constant 0 : i32
    %c0_i32_0 = arith.constant 0 : i32
    %c0_i32_1 = arith.constant 0 : i32
    return %arg0, %c0_i32, %c0_i32_0 : i32, i32, i32
  }
}

</mosaic_0001>

<llo_original>
// kernel: tpu_custom_call.1
$region0: #{tpu_custom_call.1}
  #allocation0 [shape = 'u32[]', space=smem, size = 0x4, offset = 0x4, fixed_abs, tag = 'smem constant byte address 0x4 - core index']
  #allocation1 [shape = 'u32[72,128]{1,0:T(1,128)}', space=vmem, size = 0x9000, scoped, tag = 'internal scratch']
  #allocation2 [shape = 'f32[1,256]{1,0:T(1,128)}', space=vmem, size = 0x400, scoped, tag = 'scratch operand']
  #allocation3 [shape = 'f32[1,256]{1,0:T(1,128)}', space=vmem, size = 0x400, scoped, tag = 'scratch operand']
  %s0 = inlined_call_operand.hbm [shape: f32[2,4,256], index: 0, kind: input, shape index: {}]
  %s1 = inlined_call_operand.hbm [shape: s32[2,1,256], index: 1, kind: input, shape index: {}]
  %s2 = inlined_call_operand.vmem [shape: f32[2,1,1], index: 2, kind: output, shape index: {0}]
  %s3 = inlined_call_operand.vmem [shape: f32[2,1,1], index: 3, kind: output, shape index: {1}]
  %4 = xla_tuple %s2, %s3
  %s5 = sld [smem:[#allocation0]]
  $region65: #{tpu_custom_call.1} parent=0
    _
  %s7 = ssub.s32 1, %s5
  %s8 = scalar_select 0, %s7, %s5
  $region1: #{tpu_custom_call.1} parent=0
    #allocation4 [shape = 'u8[8192]{0}', space=vmem, size = 0x2000, scoped, tag = 'input window, operand 0']
    #allocation5 [shape = 's32[2]{0}', space=sflag, size = 0x8, scoped, tag = 'scoped memory for tpu_custom_call.1']
    #allocation6 [shape = 'u8[2048]{0}', space=vmem, size = 0x800, scoped, tag = 'input window, operand 1']
    #allocation7 [shape = 's32[2]{0}', space=sflag, size = 0x8, scoped, tag = 'scoped memory for tpu_custom_call.1']
    %9 = vsyncpa [#allocation5], 0
    %s10 = scalar_lea.sflag [#allocation5], 1
    %11 = vsyncpa %s10, 0
    %12 = vsyncpa [#allocation7], 0
    %s13 = scalar_lea.sflag [#allocation7], 1
    %14 = vsyncpa %s13, 0
    loop: start=0, step=1, limit=4
    $region2: #{tpu_custom_call.1} parent=1 // loop_pre_header
      _
    $region3: #{tpu_custom_call.1} parent=1 // loop_header
      %s16 = sphi 0, %s20
      %p17 = scmp.ge.s32.totalorder %s16, 4
      %s23 = sphi 0, %s35
      %s24 = sphi 0, %s31
      %s25 = sphi 0, %s23
      %s26 = sphi 0, %s24
      %s27 = sphi 0, %s25
      %s28 = sphi 0, %s26
      %s40 = sphi 0, %s42
      %s43 = sphi 0, %s40
      %s44 = sphi 0, %s43
      %s60 = sphi 0, %s44
      %s68 = sphi 0, %s70
      %s71 = sphi 0, %s68
      %s72 = sphi 0, %s71
      %s88 = sphi 0, %s72
      %s94 = sphi 0, %s96
      %s97 = sphi 0, %s94
      %s98 = sphi 0, %s97
      %s114 = sphi 0, %s98
      %s120 = sphi 0, %s122
      %s123 = sphi 0, %s120
      %s124 = sphi 0, %s123
      %s140 = sphi 0, %s124
    $region4: #{tpu_custom_call.1} parent=1 // loop_header_branch
      %19 = sbr.rel (%p17) target = $region8
    $region5: #{tpu_custom_call.1} parent=1 // loop_body
      %s21 = ssub.s32 %s16, 1
      %s22 = ssub.s32 %s16, 2
      %s29 = sadd.s32 1, %s24
      %p30 = scmp.ge.s32.totalorder %s29, 1
      %s31 = scalar_select %p30, 0, %s29
      %s32 = sadd.s32 1, %s23
      %s33 = scalar_select %p30, %s32, %s23
      %p34 = scmp.ge.s32.totalorder %s33, 2
      %s35 = scalar_select %p34, 0, %s33
      %s36 = ssub.s32 %s23, %s35
      %s37 = ssub.s32 %s24, %s31
      %s38 = sor.u32 %s36, %s37
      %p39 = scmp.eq.s32.totalorder %s38, 0
      %s41 = sadd.s32 %s40, 1
      %s42 = scalar_select %p39, %s40, %s41
      %p45 = pneg %p39
      %p46 = scmp.eq.s32.totalorder %s16, 1
      %p47 = por %p45, %p46
      %p48 = scmp.ne.s32.totalorder %s40, %s43
      %p49 = scmp.eq.s32.totalorder %s16, 0
      %p50 = por %p48, %p49
      %p51 = scmp.ne.s32.totalorder %s40, %s43
      %p52 = scmp.eq.s32.totalorder %s21, 1
      %p53 = por %p51, %p52
      %p54 = scmp.ne.s32.totalorder %s43, %s44
      %p55 = scmp.eq.s32.totalorder %s21, 0
      %p56 = por %p54, %p55
      %p57 = scmp.ne.s32.totalorder %s43, %s44
      %p58 = scmp.eq.s32.totalorder %s22, 1
      %p59 = por %p57, %p58
      %p61 = scmp.ne.s32.totalorder %s44, %s60
      %p62 = scmp.eq.s32.totalorder %s22, 0
      %p63 = por %p61, %p62
      %s64 = ssub.s32 %s23, %s35
      %s65 = ssub.s32 %s24, %s31
      %s66 = sor.u32 %s64, %s65
      %p67 = scmp.eq.s32.totalorder %s66, 0
      %s69 = sadd.s32 %s68, 1
      %s70 = scalar_select %p67, %s68, %s69
      %p73 = pneg %p67
      %p74 = scmp.eq.s32.totalorder %s16, 1
      %p75 = por %p73, %p74
      %p76 = scmp.ne.s32.totalorder %s68, %s71
      %p77 = scmp.eq.s32.totalorder %s16, 0
      %p78 = por %p76, %p77
      %p79 = scmp.ne.s32.totalorder %s68, %s71
      %p80 = scmp.eq.s32.totalorder %s21, 1
      %p81 = por %p79, %p80
      %p82 = scmp.ne.s32.totalorder %s71, %s72
      %p83 = scmp.eq.s32.totalorder %s21, 0
      %p84 = por %p82, %p83
      %p85 = scmp.ne.s32.totalorder %s71, %s72
      %p86 = scmp.eq.s32.totalorder %s22, 1
      %p87 = por %p85, %p86
      %p89 = scmp.ne.s32.totalorder %s72, %s88
      %p90 = scmp.eq.s32.totalorder %s22, 0
      %p91 = por %p89, %p90
      %s92 = ssub.s32 %s23, %s35
      %p93 = scmp.eq.s32.totalorder %s92, 0
      %s95 = sadd.s32 %s94, 1
      %s96 = scalar_select %p93, %s94, %s95
      %p99 = pneg %p93
      %p100 = scmp.eq.s32.totalorder %s16, 1
      %p101 = por %p99, %p100
      %p102 = scmp.ne.s32.totalorder %s94, %s97
      %p103 = scmp.eq.s32.totalorder %s16, 0
      %p104 = por %p102, %p103
      %p105 = scmp.ne.s32.totalorder %s94, %s97
      %p106 = scmp.eq.s32.totalorder %s21, 1
      %p107 = por %p105, %p106
      %p108 = scmp.ne.s32.totalorder %s97, %s98
      %p109 = scmp.eq.s32.totalorder %s21, 0
      %p110 = por %p108, %p109
      %p111 = scmp.ne.s32.totalorder %s97, %s98
      %p112 = scmp.eq.s32.totalorder %s22, 1
      %p113 = por %p111, %p112
      %p115 = scmp.ne.s32.totalorder %s98, %s114
      %p116 = scmp.eq.s32.totalorder %s22, 0
      %p117 = por %p115, %p116
      %s118 = ssub.s32 %s23, %s35
      %p119 = scmp.eq.s32.totalorder %s118, 0
      %s121 = sadd.s32 %s120, 1
      %s122 = scalar_select %p119, %s120, %s121
      %p125 = pneg %p119
      %p126 = scmp.eq.s32.totalorder %s16, 1
      %p127 = por %p125, %p126
      %p128 = scmp.ne.s32.totalorder %s120, %s123
      %p129 = scmp.eq.s32.totalorder %s16, 0
      %p130 = por %p128, %p129
      %p131 = scmp.ne.s32.totalorder %s120, %s123
      %p132 = scmp.eq.s32.totalorder %s21, 1
      %p133 = por %p131, %p132
      %p134 = scmp.ne.s32.totalorder %s123, %s124
      %p135 = scmp.eq.s32.totalorder %s21, 0
      %p136 = por %p134, %p135
      %p137 = scmp.ne.s32.totalorder %s123, %s124
      %p138 = scmp.eq.s32.totalorder %s22, 1
      %p139 = por %p137, %p138
      %p141 = scmp.ne.s32.totalorder %s124, %s140
      %p142 = scmp.eq.s32.totalorder %s22, 0
      %p143 = por %p141, %p142
      %p144 = scmp.le.s32.totalorder 1, %s16
      %p145 = scmp.lt.s32.totalorder %s16, 3
      %p146 = pnand %p144, %p145
      %p147 = pneg %p146
      // Predicated region
      $region9: #{tpu_custom_call.1} parent=5 // pred_check
        _
      $region10: #{tpu_custom_call.1} parent=5 // pred_check_branch
        %149 = sbr.rel (%p146) target = $region12
      $region11: #{tpu_custom_call.1} parent=5 // pred_region
        %s150 = ssub.s32 %s16, 1
      $region12: #{tpu_custom_call.1} parent=5 // pred_fallthru
        _
      %p151 = scmp.lt.s32.totalorder %s16, 2
      // Predicated region
      $region13: #{tpu_custom_call.1} parent=5 // pred_check
        %p152 = pneg %p151
      $region14: #{tpu_custom_call.1} parent=5 // pred_check_branch
        %154 = sbr.rel (%p152) target = $region16
      $region15: #{tpu_custom_call.1} parent=5 // pred_region
        // Predicated region
        $region17: #{tpu_custom_call.1} parent=15 // pred_check
          %p155 = pneg %p50
        $region18: #{tpu_custom_call.1} parent=15 // pred_check_branch
          %157 = sbr.rel (%p155) target = $region20
        $region19: #{tpu_custom_call.1} parent=15 // pred_region
          %s158 = sand.u32 %s40, 1
          %s159 = scalar_lea.sflag [#allocation5], %s158
          %s160 = sand.u32 %s40, 1
          %s161 = smul.addr %s160, 8
          %s162 = scalar_lea.vmem [#allocation4], %s161
          %s163 = smul.u32 2, %s24
          %165 = vsyncadd %s159, 0
          %s166 = smul.addr %s23, 2
          %s167 = sadd.s32 %s163, %s166
          %s168 = smul.addr %s167, 4
          %s169 = scalar_lea.hbm %s0, %s168
          %s171 = sshll.u32 %s169, 4
          %s172 = int_to_ptr.hbm [resolvable:$true] %s171
          %s173 = sshll.u32 %s162, 4
          %s174 = int_to_ptr.vmem [resolvable:$true] %s173
          %176 = dma.hbm_to_vmem [thread:$0]  %s172, 128, %s174, %s159
        $region20: #{tpu_custom_call.1} parent=15 // pred_fallthru
          _
        // Predicated region
        $region21: #{tpu_custom_call.1} parent=15 // pred_check
          %p177 = pneg %p78
        $region22: #{tpu_custom_call.1} parent=15 // pred_check_branch
          %179 = sbr.rel (%p177) target = $region24
        $region23: #{tpu_custom_call.1} parent=15 // pred_region
          %s180 = sand.u32 %s68, 1
          %s181 = scalar_lea.sflag [#allocation7], %s180
          %s182 = sand.u32 %s68, 1
          %s183 = smul.addr %s182, 2
          %s184 = scalar_lea.vmem [#allocation6], %s183
          %s185 = smul.u32 2, %s24
          %187 = vsyncadd %s181, 0
          %s188 = smul.addr %s23, 2
          %s189 = sadd.s32 %s185, %s188
          %s190 = scalar_lea.hbm %s1, %s189
          %s192 = sshll.u32 %s190, 4
          %s193 = int_to_ptr.hbm [resolvable:$true] %s192
          %s194 = sshll.u32 %s184, 4
          %s195 = int_to_ptr.vmem [resolvable:$true] %s194
          %197 = dma.hbm_to_vmem [thread:$0]  %s193, 32, %s195, %s181
        $region24: #{tpu_custom_call.1} parent=15 // pred_fallthru
          _
      $region16: #{tpu_custom_call.1} parent=5 // pred_fallthru
        _
      %p198 = scmp.le.s32.totalorder 1, %s16
      %p199 = scmp.lt.s32.totalorder %s16, 3
      %p200 = pnand %p198, %p199
      %p201 = pneg %p200
      // Predicated region
      $region25: #{tpu_custom_call.1} parent=5 // pred_check
        _
      $region26: #{tpu_custom_call.1} parent=5 // pred_check_branch
        %203 = sbr.rel (%p200) target = $region28
      $region27: #{tpu_custom_call.1} parent=5 // pred_region
        %s204 = ssub.s32 %s16, 1
        %s205 = sand.u32 %s43, 1
        %s206 = scalar_lea.sflag [#allocation5], %s205
        %s207 = sand.u32 %s43, 1
        %s208 = smul.addr %s207, 8
        %s209 = scalar_lea.vmem [#allocation4], %s208
        // Predicated region
        $region29: #{tpu_custom_call.1} parent=27 // pred_check
          %p210 = pneg %p56
        $region30: #{tpu_custom_call.1} parent=27 // pred_check_branch
          %212 = sbr.rel (%p210) target = $region32
        $region31: #{tpu_custom_call.1} parent=27 // pred_region
          %214 = dma.done %s206, 128
        $region32: #{tpu_custom_call.1} parent=27 // pred_fallthru
          _
        %s215 = sand.u32 %s71, 1
        %s216 = scalar_lea.sflag [#allocation7], %s215
        %s217 = sand.u32 %s71, 1
        %s218 = smul.addr %s217, 2
        %s219 = scalar_lea.vmem [#allocation6], %s218
        // Predicated region
        $region33: #{tpu_custom_call.1} parent=27 // pred_check
          %p220 = pneg %p84
        $region34: #{tpu_custom_call.1} parent=27 // pred_check_branch
          %222 = sbr.rel (%p220) target = $region36
        $region35: #{tpu_custom_call.1} parent=27 // pred_region
          %224 = dma.done %s216, 32
        $region36: #{tpu_custom_call.1} parent=27 // pred_fallthru
          _
        %s225 = sand.u32 %s43, 1
        %s226 = scalar_lea.sflag [#allocation5], %s225
        %s227 = sand.u32 %s43, 1
        %s228 = smul.addr %s227, 8
        %s229 = scalar_lea.vmem [#allocation4], %s228
        %p230 = pneg %p56
        %p231 = pneg %p53
        %s232 = sand.u32 %s71, 1
        %s233 = scalar_lea.sflag [#allocation7], %s232
        %s234 = sand.u32 %s71, 1
        %s235 = smul.addr %s234, 2
        %s236 = scalar_lea.vmem [#allocation6], %s235
        %p237 = pneg %p84
        %p238 = pneg %p81
        %p239 = pneg %p110
        %p240 = pneg %p107
        %p241 = scmp.lt.s32.totalorder %s25, 1
        %s242 = scalar_select %p241, %s25, 1
        %s243 = scalar_lea.vmem %s2, %s242
        %p244 = pneg %p136
        %p245 = pneg %p133
        %p246 = scmp.lt.s32.totalorder %s25, 1
        %s247 = scalar_select %p246, %s25, 1
        %s248 = scalar_lea.vmem %s3, %s247
        %s249 = smul.u32 2, %s26
        %s250 = smul.u32 2, %s26
        %p251 = scmp.lt.s32.totalorder %s25, 1
        %s252 = scalar_select %p251, %s25, 1
        %s253 = scalar_lea.vmem %s2, %s252
        %p254 = scmp.lt.s32.totalorder %s25, 1
        %s255 = scalar_select %p254, %s25, 1
        %s256 = scalar_lea.vmem %s3, %s255
        %p257 = scmp.eq.s32.totalorder %s26, 0
        // Predicated region
        $region37: #{tpu_custom_call.1} parent=27 // pred_check
          %p258 = pneg %p257
        $region38: #{tpu_custom_call.1} parent=27 // pred_check_branch
          %260 = sbr.rel (%p258) target = $region40
        $region39: #{tpu_custom_call.1} parent=27 // pred_region
          %v261 = vlaneseq
          %vm262 = vcmp.ge.s32.totalorder %v261, 0
          %vm263 = vcmp.lt.s32.totalorder %v261, 256
          %vm264 = vmand %vm262, %vm263
          %265 = vst.msk [vmem:[#allocation2] sm:$0x3] %vm264, 0.0
          %266 = vst.msk [vmem:[#allocation3] sm:$0x3] %vm264, 0.0
        $region40: #{tpu_custom_call.1} parent=27 // pred_fallthru
          _
        %v267 = vld [vmem:[%s209] sm:$0xff]
        %v268 = vld [vmem:[%s219] sm:$0x3]
        %270 = vst [vmem:[#allocation1] ss:$2 sm:$0xff] %v267
        %v271 = vld.sshfl [vmem:[#allocation1] sm:$0xff pattern:$0x75316420]
        %v272 = vld.sshfl [vmem:[#allocation1 + $0x8] sm:$0xff pattern:$0x75316420]
        %vm275 = vcmask 1043456
        %v276 = vsel %vm275, %v271, -inf
        %v277 = vrot.slane %v276, 4
        %v278 = vmax.f32 %v276, %v277
        %v279 = vrot.slane %v278, 2
        %v280 = vmax.f32 %v278, %v279
        %v281 = vrot.slane %v280, 1
        %v282 = vmax.f32 %v280, %v281
        %v283 = vsel %vm275, %v272, -inf
        %v284 = vrot.slane %v283, 4
        %v285 = vmax.f32 %v283, %v284
        %v286 = vrot.slane %v285, 2
        %v287 = vmax.f32 %v285, %v286
        %v288 = vrot.slane %v287, 1
        %v289 = vmax.f32 %v287, %v288
        %v292 = vrot.slane %v289, 4
        %v293 = vsel %vm275, %v282, %v292
        %v295 = vsub.f32 %v267, %v293
        %v296 = vmul.f32 %v295, 1.442695
        %v297 = vpow.pop %v296
        %299 = vst [vmem:[#allocation1] ss:$2 sm:$0xff] %v297
        %v300 = vld.sshfl [vmem:[#allocation1] sm:$0xff pattern:$0x75316420]
        %v301 = vld.sshfl [vmem:[#allocation1 + $0x8] sm:$0xff pattern:$0x75316420]
        %v304 = vsel %vm275, %v300, 0.0
        %v305 = vrot.slane %v304, 4
        %v306 = vadd.f32 %v304, %v305
        %v307 = vrot.slane %v306, 2
        %v308 = vadd.f32 %v306, %v307
        %v309 = vrot.slane %v308, 1
        %v310 = vadd.f32 %v308, %v309
        %v311 = vsel %vm275, %v301, 0.0
        %v312 = vrot.slane %v311, 4
        %v313 = vadd.f32 %v311, %v312
        %v314 = vrot.slane %v313, 2
        %v315 = vadd.f32 %v313, %v314
        %v316 = vrot.slane %v315, 1
        %v317 = vadd.f32 %v315, %v316
        %v318 = vlog2.pop %v310
        %v319 = vmul.f32 %v318, 0.6931472
        %v320 = vlog2.pop %v317
        %v321 = vmul.f32 %v320, 0.6931472
        %v322 = vlaneseq
        %v323 = vshrl.u32 %v322, 7
        %v324 = vperm.slane %v268, 0
        %v325 = vperm.slane %v268, 1
        %vm326 = vcmp.eq.s32.totalorder %v323, %v324
        %vm327 = vcmp.eq.s32.totalorder %v323, %v325
        %329 = vst [vmem:[#allocation1] ss:$2 sm:$0xff] %v295
        %v330 = vld.sshfl [vmem:[#allocation1] sm:$0xff pattern:$0x75316420]
        %v331 = vld.sshfl [vmem:[#allocation1 + $0x8] sm:$0xff pattern:$0x75316420]
        %v334 = vsel %vm326, %v330, 0.0
        %v335 = vsel %vm327, %v331, 0.0
        %v336 = vsel %vm275, %v334, 0.0
        %v337 = vrot.slane %v336, 4
        %v338 = vadd.f32 %v336, %v337
        %v339 = vrot.slane %v338, 2
        %v340 = vadd.f32 %v338, %v339
        %v341 = vrot.slane %v340, 1
        %v342 = vadd.f32 %v340, %v341
        %v343 = vsel %vm275, %v335, 0.0
        %v344 = vrot.slane %v343, 4
        %v345 = vadd.f32 %v343, %v344
        %v346 = vrot.slane %v345, 2
        %v347 = vadd.f32 %v345, %v346
        %v348 = vrot.slane %v347, 1
        %v349 = vadd.f32 %v347, %v348
        %s350 = smul.u32 %s26, 256
        %v351 = vlaneseq
        %v352 = vand.u32 %v351, 127
        %v353 = vadd.s32 %v352, 128
        %v354 = vstv %s350
        %v355 = vadd.s32 %v354, %v352
        %v356 = vadd.s32 %v354, %v353
        %vm357 = vcmp.ne.s32.totalorder %v268, 255
        %vm358 = vcmp.lt.s32.totalorder %v355, 256
        %vm359 = vcmp.lt.s32.totalorder %v356, 256
        %v360 = vsel %vm358, 1, 0
        %v361 = vsel %vm359, 1, 0
        %v362 = vrot.slane %v361, 7
        %vm363 = vcmask 1040384
        %v364 = vsel %vm363, %v360, %v362
        %vm365 = vcmp.ne.s32.totalorder %v364, 0
        %vm366 = vmand %vm357, %vm365
        %v367 = vsub.f32 %v319, %v342
        %v368 = vsub.f32 %v321, %v349
        %v369 = vld [vmem:[#allocation2] sm:$0x3]
        %v372 = vrot.slane %v368, 7
        %v373 = vsel %vm363, %v367, %v372
        %v375 = vsel %vm366, %v373, 0.0
        %v376 = vadd.f32 %v369, %v375
        %v377 = vlaneseq
        %vm378 = vcmp.ge.s32.totalorder %v377, 0
        %vm379 = vcmp.lt.s32.totalorder %v377, 256
        %vm380 = vmand %vm378, %vm379
        %381 = vst.msk [vmem:[#allocation2] sm:$0x3] %vm380, %v376
        %v382 = vld [vmem:[#allocation3] sm:$0x3]
        %v383 = vsel %vm366, 1.0, 0.0
        %v384 = vadd.f32 %v382, %v383
        %385 = vst.msk [vmem:[#allocation3] sm:$0x3] %vm380, %v384
        // Predicated region
        $region41: #{tpu_custom_call.1} parent=27 // pred_check
          %p386 = pneg %p257
        $region42: #{tpu_custom_call.1} parent=27 // pred_check_branch
          %388 = sbr.rel (%p386) target = $region44
        $region43: #{tpu_custom_call.1} parent=27 // pred_region
          %v389 = vld [vmem:[#allocation2] sm:$0x3]
          %v391 = vperm.slane %v389, 0
          %v392 = vperm.slane %v389, 1
          %v395 = vsel %vm363, %v391, 0.0
          %v396 = vsel %vm363, %v392, 0.0
          %v397 = vadd.f32 %v395, %v396
          %398 = vadd.xlane.f32.xlu0 %v397
          %v399 = vpop.xlane.xlu0 %398
          %vm400 = vcmask 0
          %401 = vst.msk [vmem:[%s253] sm:$0x1] %vm400, %v399
          %v402 = vld [vmem:[#allocation3] sm:$0x3]
          %v404 = vperm.slane %v402, 0
          %v405 = vperm.slane %v402, 1
          %v408 = vsel %vm363, %v404, 0.0
          %v409 = vsel %vm363, %v405, 0.0
          %v410 = vadd.f32 %v408, %v409
          %411 = vadd.xlane.f32.xlu0 %v410
          %v412 = vpop.xlane.xlu0 %411
          %413 = vst.msk [vmem:[%s256] sm:$0x1] %vm400, %v412
        $region44: #{tpu_custom_call.1} parent=27 // pred_fallthru
          _
        %p414 = scmp.lt.s32.totalorder %s25, 1
        %s415 = scalar_select %p414, %s25, 1
        %s416 = scalar_lea.vmem %s2, %s415
        %p417 = scmp.lt.s32.totalorder %s25, 1
        %s418 = scalar_select %p417, %s25, 1
        %s419 = scalar_lea.vmem %s3, %s418
        // Predicated region
        $region45: #{tpu_custom_call.1} parent=27 // pred_check
          %p420 = pneg %p107
        $region46: #{tpu_custom_call.1} parent=27 // pred_check_branch
          %422 = sbr.rel (%p420) target = $region48
        $region47: #{tpu_custom_call.1} parent=27 // pred_region
          _
        $region48: #{tpu_custom_call.1} parent=27 // pred_fallthru
          _
        // Predicated region
        $region49: #{tpu_custom_call.1} parent=27 // pred_check
          %p423 = pneg %p133
        $region50: #{tpu_custom_call.1} parent=27 // pred_check_branch
          %425 = sbr.rel (%p423) target = $region52
        $region51: #{tpu_custom_call.1} parent=27 // pred_region
          _
        $region52: #{tpu_custom_call.1} parent=27 // pred_fallthru
          _
      $region28: #{tpu_custom_call.1} parent=5 // pred_fallthru
        _
      %p426 = scmp.le.s32.totalorder 2, %s16
      // Predicated region
      $region53: #{tpu_custom_call.1} parent=5 // pred_check
        %p427 = pneg %p426
      $region54: #{tpu_custom_call.1} parent=5 // pred_check_branch
        %429 = sbr.rel (%p427) target = $region56
      $region55: #{tpu_custom_call.1} parent=5 // pred_region
        %s430 = ssub.s32 %s16, 2
        // Predicated region
        $region57: #{tpu_custom_call.1} parent=55 // pred_check
          %p431 = pneg %p113
        $region58: #{tpu_custom_call.1} parent=55 // pred_check_branch
          %433 = sbr.rel (%p431) target = $region60
        $region59: #{tpu_custom_call.1} parent=55 // pred_region
          %p434 = scmp.lt.s32.totalorder %s27, 1
          %s435 = scalar_select %p434, %s27, 1
          %s436 = scalar_lea.vmem %s2, %s435
        $region60: #{tpu_custom_call.1} parent=55 // pred_fallthru
          _
        // Predicated region
        $region61: #{tpu_custom_call.1} parent=55 // pred_check
          %p437 = pneg %p139
        $region62: #{tpu_custom_call.1} parent=55 // pred_check_branch
          %439 = sbr.rel (%p437) target = $region64
        $region63: #{tpu_custom_call.1} parent=55 // pred_region
          %p440 = scmp.lt.s32.totalorder %s27, 1
          %s441 = scalar_select %p440, %s27, 1
          %s442 = scalar_lea.vmem %s3, %s441
        $region64: #{tpu_custom_call.1} parent=55 // pred_fallthru
          _
      $region56: #{tpu_custom_call.1} parent=5 // pred_fallthru
        _
    $region6: #{tpu_custom_call.1} parent=1 // loop_footer
      %s20 = sadd.s32 1, %s16
    $region7: #{tpu_custom_call.1} parent=1 // loop_footer_branch
      %15 = sbr.rel target = $region3
    $region8: #{tpu_custom_call.1} parent=1 // loop_exit
      _
    %443 = vsyncpa [#allocation5], 1
    %s444 = scalar_lea.sflag [#allocation5], 1
    %445 = vsyncpa %s444, 1
    %446 = vsyncpa [#allocation7], 1
    %s447 = scalar_lea.sflag [#allocation7], 1
    %448 = vsyncpa %s447, 1

</llo_original>
